<compile_context>
chip_gen: v7x
topology: tpu7x:2x2x1
jax: 0.10.0
libtpu: 0.0.40
codegen_flags: <defaults>
</compile_context>

<pallas_src>
import jax
import jax.numpy as jnp
from jax.experimental import pallas as pl
from jax.experimental.pallas import tpu as pltpu


_LANE = 128
_PALLAS_MIN_ROWS = 512  # below this, launch overhead dominates -> plain XLA


def _round_up(x, m):
    return ((x + m - 1) // m) * m


def mlp_kernel(x_ref, w1_ref, b1_ref, w2_ref, b2_ref, o_ref):
    # Cast x to the matmul-input dtype in-kernel (no wrapper-side padded/cast
    # copy of x; the VPU cast is free filler under the DMA/MXU work).
    x = x_ref[...].astype(w1_ref.dtype)
    # fc1: [TM, D] @ [D, Hp] with f32 accumulation on the MXU.
    h = jnp.dot(x, w1_ref[...], preferred_element_type=jnp.float32)
    # Bias + ReLU in f32 on the VPU (single pass).
    h = jnp.maximum(h + b1_ref[...], 0.0)
    # fc2: [TM, Hp] @ [Hp, Cp] -> f32 accumulate, bias, one lane-dense store.
    y = jnp.dot(h.astype(w2_ref.dtype), w2_ref[...],
                preferred_element_type=jnp.float32)
    o_ref[...] = (y + b2_ref[...]).astype(o_ref.dtype)


def prepare_mlp_params(w1, b1, w2, b2, *, compute_dtype=None):
    """One-time pad/cast of the MLP parameters (hoisted out of the call path).

    w1: [D, H], b1: [H] or [1, H], w2: [H, C], b2: [C] or [1, C].
    compute_dtype: optional low-precision matmul-input dtype (bf16 is fine on
    every generation: v5e/v6e/v7x MXUs are bf16-native; bias/ReLU stay f32).
    Hidden/output feature dims are zero-padded to 128 lanes; the padding is
    exact (padded hidden units = relu(0+0)=0, padded w2 rows are 0).
    """
    D, H = w1.shape
    C = w2.shape[1]
    Hp = _round_up(H, _LANE)
    Cp = _round_up(C, _LANE)
    mm_dtype = compute_dtype if compute_dtype is not None else w1.dtype
    b1 = jnp.reshape(b1, (1, H))
    b2 = jnp.reshape(b2, (1, C))
    w1p = jnp.zeros((D, Hp), mm_dtype).at[:, :H].set(w1.astype(mm_dtype))
    b1p = jnp.zeros((1, Hp), jnp.float32).at[:, :H].set(b1.astype(jnp.float32))
    w2p = jnp.zeros((Hp, Cp), mm_dtype).at[:H, :C].set(w2.astype(mm_dtype))
    b2p = jnp.zeros((1, Cp), jnp.float32).at[:, :C].set(b2.astype(jnp.float32))
    return dict(w1=w1p, b1=b1p, w2=w2p, b2=b2p, num_classes=C)


def mlp_forward(x, params, *, block_m=None, out_dtype=None, force_pallas=None):
    """relu(x @ w1 + b1) @ w2 + b2 with params from prepare_mlp_params.

    x: [B, D] -> [B, C].
    out_dtype: dtype of the (padded, lane-dense) output writeback; pass bf16
    to halve the dominant HBM write term at scale.  Defaults to x.dtype.
    """
    B, D = x.shape
    w1p, b1p, w2p, b2p = params["w1"], params["b1"], params["w2"], params["b2"]
    C = params["num_classes"]
    Hp = w1p.shape[1]
    Cp = w2p.shape[1]
    assert w1p.shape[0] == D

    out_dtype = out_dtype if out_dtype is not None else x.dtype

    use_pallas = (force_pallas if force_pallas is not None
                  else B >= _PALLAS_MIN_ROWS)
    if not use_pallas:
        # Small-batch fallback: the fixed pallas_call launch + 5 DMAs dominate
        # the tiny amount of real work, so let XLA handle it (same math).
        h = jnp.dot(x.astype(w1p.dtype), w1p,
                    preferred_element_type=jnp.float32)
        h = jnp.maximum(h + b1p, 0.0)
        y = jnp.dot(h.astype(w2p.dtype), w2p,
                    preferred_element_type=jnp.float32) + b2p
        return y[:, :C].astype(out_dtype)

    # Row-tile granularity: 8 sublanes for pure-f32 tiles, 16 when any
    # sub-32-bit dtype is in play (two rows pack per sublane for bf16).
    row_mult = 8
    if (jnp.dtype(w1p.dtype).itemsize < 4
            or jnp.dtype(out_dtype).itemsize < 4):
        row_mult = 16

    if block_m is None:
        # Big tiles amortize the ~0.35us/step overhead (~85% of HBM roofline at
        # 512-1024 rows vs ~63% at 256); cap at half the batch so the grid has
        # >=2 steps for v7x's two TensorCores whenever the batch allows it.
        block_m = min(1024, max(row_mult, _round_up(pl.cdiv(B, 2), row_mult)))
    block_m = max(row_mult, _round_up(block_m, row_mult))
    block_m = min(block_m, _round_up(B, row_mult))
    num_steps = pl.cdiv(B, block_m)

    mm_bytes = jnp.dtype(w1p.dtype).itemsize
    cost = pl.CostEstimate(
        flops=2 * B * (D * Hp + Hp * Cp),
        transcendentals=0,
        bytes_accessed=(x.size * jnp.dtype(x.dtype).itemsize
                        + (w1p.size + w2p.size) * mm_bytes
                        + (b1p.size + b2p.size) * 4
                        + B * Cp * jnp.dtype(out_dtype).itemsize),
    )

    out = pl.pallas_call(
        mlp_kernel,
        out_shape=jax.ShapeDtypeStruct((B, Cp), out_dtype),
        grid_spec=pltpu.PrefetchScalarGridSpec(
            num_scalar_prefetch=0,
            grid=(num_steps,),
            in_specs=[
                # x streamed in (block_m, D) tiles; partial last tile is fine
                # (rows are independent, OOB output rows are write-masked).
                pl.BlockSpec((block_m, D), lambda i: (i, 0)),
                pl.BlockSpec((D, Hp), lambda i: (0, 0)),   # w1: resident
                pl.BlockSpec((1, Hp), lambda i: (0, 0)),   # b1: resident
                pl.BlockSpec((Hp, Cp), lambda i: (0, 0)),  # w2: resident
                pl.BlockSpec((1, Cp), lambda i: (0, 0)),   # b2: resident
            ],
            out_specs=pl.BlockSpec((block_m, Cp), lambda i: (i, 0)),
        ),
        compiler_params=pltpu.CompilerParams(
            dimension_semantics=("parallel",),
        ),
        cost_estimate=cost,
    )(x, w1p, b1p, w2p, b2p)

    return out[:, :C]


def init_params(key, input_size, num_classes, hidden=16, dtype=jnp.float32):
    """Deterministic init mimicking nn.Linear's U(-1/sqrt(fan_in), 1/sqrt(fan_in)).

    Weights are stored pre-transposed as [in_features, out_features] so the
    kernel computes plain x @ W + b on the MXU.
    """
    k1, k2, k3, k4 = jax.random.split(key, 4)
    bound1 = 1.0 / jnp.sqrt(input_size)
    bound2 = 1.0 / jnp.sqrt(hidden)
    w1 = jax.random.uniform(k1, (input_size, hidden), dtype, -bound1, bound1)
    b1 = jax.random.uniform(k2, (1, hidden), dtype, -bound1, bound1)
    w2 = jax.random.uniform(k3, (hidden, num_classes), dtype, -bound2, bound2)
    b2 = jax.random.uniform(k4, (1, num_classes), dtype, -bound2, bound2)
    return w1, b1, w2, b2


if __name__ == "__main__":
    input_size = 32
    num_classes = 10
    batch = 8

    key = jax.random.PRNGKey(0)
    kx, kp, kb = jax.random.split(key, 3)
    x = jax.random.normal(kx, (batch, input_size), dtype=jnp.float32)
    w1, b1, w2, b2 = init_params(kp, input_size, num_classes)

    # Reference in plain JAX (same math as the PyTorch module).
    ref = jnp.maximum(x @ w1 + b1, 0.0) @ w2 + b2

    # One-time parameter prep (hoisted out of the per-call path).
    params_f32 = prepare_mlp_params(w1, b1, w2, b2)
    params_bf16 = prepare_mlp_params(w1, b1, w2, b2, compute_dtype=jnp.bfloat16)

    # 1) Deployment shape (B=8): auto-dispatch uses the plain-XLA fallback.
    out_small = mlp_forward(x, params_f32)
    jax.block_until_ready(out_small)
    assert out_small.shape == (batch, num_classes)
    assert jnp.allclose(out_small, ref, atol=1e-5, rtol=1e-5)

    # 2) Same shape, Pallas kernel forced (single partial tile, f32 path).
    out_pallas = mlp_forward(x, params_f32, force_pallas=True)
    jax.block_until_ready(out_pallas)
    assert out_pallas.shape == (batch, num_classes)
    assert jnp.allclose(out_pallas, ref, atol=1e-5, rtol=1e-5)

    # 3) Larger streamed batch: bf16 matmul inputs (in-kernel cast of f32 x),
    #    bf16 padded-output writeback, multi-step "parallel" grid.
    big_b = 512
    xb = jax.random.normal(kb, (big_b, input_size), dtype=jnp.float32)
    ref_big = jnp.maximum(xb @ w1 + b1, 0.0) @ w2 + b2
    out_big = mlp_forward(xb, params_bf16, out_dtype=jnp.bfloat16)
    jax.block_until_ready(out_big)
    assert out_big.shape == (big_b, num_classes)
    assert jnp.allclose(out_big.astype(jnp.float32), ref_big,
                        atol=5e-2, rtol=5e-2)

    print("KERNEL_OK")
</pallas_src>

<mosaic_0001>
module attributes {stable_mosaic.version = 11 : i64} {
  func.func @mlp_kernel(%arg0: i32, %arg1: memref<8x32xf32, #tpu.memory_space<vmem>>, %arg2: memref<32x128xf32, #tpu.memory_space<vmem>>, %arg3: memref<1x128xf32, #tpu.memory_space<vmem>>, %arg4: memref<128x128xf32, #tpu.memory_space<vmem>>, %arg5: memref<1x128xf32, #tpu.memory_space<vmem>>, %arg6: memref<8x128xf32, #tpu.memory_space<vmem>>) attributes {dimension_semantics = [#tpu.dimension_semantics<parallel>], iteration_bounds = array<i64: 1>, scalar_prefetch = 0 : i64, scratch_operands = 0 : i64, tpu.core_type = #tpu.core_type<tc>, window_params = [{transform_indices = @transform_0, window_bounds = array<i64: 8, 32>}, {pipeline_mode = #tpu.pipeline_mode<synchronous>, transform_indices = @transform_1, window_bounds = array<i64: 32, 128>}, {pipeline_mode = #tpu.pipeline_mode<synchronous>, transform_indices = @transform_2, window_bounds = array<i64: 1, 128>}, {pipeline_mode = #tpu.pipeline_mode<synchronous>, transform_indices = @transform_3, window_bounds = array<i64: 128, 128>}, {pipeline_mode = #tpu.pipeline_mode<synchronous>, transform_indices = @transform_4, window_bounds = array<i64: 1, 128>}, {transform_indices = @transform_5, window_bounds = array<i64: 8, 128>}]} {
    %c0 = arith.constant 0 : index
    %c0_0 = arith.constant 0 : index
    %0 = vector.load %arg1[%c0, %c0_0] : memref<8x32xf32, #tpu.memory_space<vmem>>, vector<8x32xf32>
    %c0_1 = arith.constant 0 : index
    %c0_2 = arith.constant 0 : index
    %1 = vector.load %arg2[%c0_1, %c0_2] : memref<32x128xf32, #tpu.memory_space<vmem>>, vector<32x128xf32>
    %cst = arith.constant dense<0.000000e+00> : vector<8x128xf32>
    %2 = tpu.matmul %0, %1, %cst {dimension_numbers = #tpu.dot_dimension_numbers<[1], [0], [0], [1], [0, 0, 1, 1], [], []>} : vector<8x32xf32>, vector<32x128xf32>, vector<8x128xf32> -> vector<8x128xf32>
    %c0_3 = arith.constant 0 : index
    %c0_4 = arith.constant 0 : index
    %3 = vector.load %arg3[%c0_3, %c0_4] : memref<1x128xf32, #tpu.memory_space<vmem>>, vector<1x128xf32>
    %4 = vector.broadcast %3 : vector<1x128xf32> to vector<8x128xf32>
    %5 = arith.addf %2, %4 : vector<8x128xf32>
    %cst_5 = arith.constant 0.000000e+00 : f32
    %6 = vector.broadcast %cst_5 : f32 to vector<8x128xf32>
    %7 = arith.maximumf %5, %6 : vector<8x128xf32>
    %c0_6 = arith.constant 0 : index
    %c0_7 = arith.constant 0 : index
    %8 = vector.load %arg4[%c0_6, %c0_7] : memref<128x128xf32, #tpu.memory_space<vmem>>, vector<128x128xf32>
    %cst_8 = arith.constant dense<0.000000e+00> : vector<8x128xf32>
    %9 = tpu.matmul %7, %8, %cst_8 {dimension_numbers = #tpu.dot_dimension_numbers<[1], [0], [0], [1], [0, 0, 1, 1], [], []>} : vector<8x128xf32>, vector<128x128xf32>, vector<8x128xf32> -> vector<8x128xf32>
    %c0_9 = arith.constant 0 : index
    %c0_10 = arith.constant 0 : index
    %10 = vector.load %arg5[%c0_9, %c0_10] : memref<1x128xf32, #tpu.memory_space<vmem>>, vector<1x128xf32>
    %11 = vector.broadcast %10 : vector<1x128xf32> to vector<8x128xf32>
    %12 = arith.addf %9, %11 : vector<8x128xf32>
    %c0_11 = arith.constant 0 : index
    %c0_12 = arith.constant 0 : index
    %13 = vector.load %arg6[%c0_11, %c0_12] : memref<8x128xf32, #tpu.memory_space<vmem>>, vector<8x128xf32>
    tpu.vector_store %arg6[%c0_11, %c0_12], %12 {strides = array<i32>} : memref<8x128xf32, #tpu.memory_space<vmem>>, vector<8x128xf32>,
    return
  }
  func.func @transform_0(%arg0: i32) -> (i32, i32) {
    %c0_i32 = arith.constant 0 : i32
    %c0_i32_0 = arith.constant 0 : i32
    return %arg0, %c0_i32 : i32, i32
  }
  func.func @transform_1(%arg0: i32) -> (i32, i32) {
    %c0_i32 = arith.constant 0 : i32
    %c0_i32_0 = arith.constant 0 : i32
    %c0_i32_1 = arith.constant 0 : i32
    return %c0_i32, %c0_i32_0 : i32, i32
  }
  func.func @transform_2(%arg0: i32) -> (i32, i32) {
    %c0_i32 = arith.constant 0 : i32
    %c0_i32_0 = arith.constant 0 : i32
    %c0_i32_1 = arith.constant 0 : i32
    return %c0_i32, %c0_i32_0 : i32, i32
  }
  func.func @transform_3(%arg0: i32) -> (i32, i32) {
    %c0_i32 = arith.constant 0 : i32
    %c0_i32_0 = arith.constant 0 : i32
    %c0_i32_1 = arith.constant 0 : i32
    return %c0_i32, %c0_i32_0 : i32, i32
  }
  func.func @transform_4(%arg0: i32) -> (i32, i32) {
    %c0_i32 = arith.constant 0 : i32
    %c0_i32_0 = arith.constant 0 : i32
    %c0_i32_1 = arith.constant 0 : i32
    return %c0_i32, %c0_i32_0 : i32, i32
  }
  func.func @transform_5(%arg0: i32) -> (i32, i32) {
    %c0_i32 = arith.constant 0 : i32
    %c0_i32_0 = arith.constant 0 : i32
    return %arg0, %c0_i32 : i32, i32
  }
}

</mosaic_0001>

<llo_original>
// kernel: tpu_custom_call.1
$region0: #{tpu_custom_call.1}
  #allocation0 [shape = 'u32[]', space=smem, size = 0x4, offset = 0x4, fixed_abs, tag = 'smem constant byte address 0x4 - core index']
  #allocation1 [shape = 'u32[144,128]{1,0:T(1,128)}', space=vmem, size = 0x12000, scoped, tag = 'internal scratch']
  %s0 = inlined_call_operand.hbm [shape: f32[8,32], index: 0, kind: input, shape index: {}]
  %s1 = inlined_call_operand.hbm [shape: f32[32,128], index: 1, kind: input, shape index: {}]
  %s2 = inlined_call_operand.vmem [shape: f32[1,128], index: 2, kind: input, shape index: {}]
  %s3 = inlined_call_operand.hbm [shape: f32[128,128], index: 3, kind: input, shape index: {}]
  %s4 = inlined_call_operand.vmem [shape: f32[1,128], index: 4, kind: input, shape index: {}]
  %s5 = inlined_call_operand.hbm [shape: f32[8,128], index: 5, kind: output, shape index: {}]
  %s6 = sld [smem:[#allocation0]]
  $region42: #{tpu_custom_call.1} parent=0
    _
  %s8 = ssub.s32 1, %s6
  %s9 = scalar_select 0, %s8, %s6
  $region1: #{tpu_custom_call.1} parent=0
    #allocation2 [shape = 'u8[4096]{0}', space=vmem, size = 0x1000, scoped, tag = 'input window, operand 0, single buffered']
    #allocation3 [shape = 's32[1]{0}', space=sflag, size = 0x4, scoped, tag = 'scoped memory for tpu_custom_call.1']
    #allocation4 [shape = 's32[1]{0}', space=sflag, size = 0x4, scoped, tag = 'scoped memory for tpu_custom_call.1']
    #allocation5 [shape = 'u8[16384]{0}', space=vmem, size = 0x4000, scoped, tag = 'input window, operand 1, single buffered']
    #allocation6 [shape = 's32[1]{0}', space=sflag, size = 0x4, scoped, tag = 'scoped memory for tpu_custom_call.1']
    #allocation7 [shape = 'u8[65536]{0}', space=vmem, size = 0x10000, scoped, tag = 'input window, operand 3, single buffered']
    #allocation8 [shape = 'u8[4096]{0}', space=vmem, size = 0x1000, scoped, tag = 'output window, operand 0, single buffered']
    %10 = vsyncpa [#allocation3], 0
    %11 = vsyncpa [#allocation6], 0
    %12 = vsyncpa [#allocation4], 0
    // Predicated region
    $region2: #{tpu_custom_call.1} parent=1 // pred_check
      _
    $region3: #{tpu_custom_call.1} parent=1 // pred_check_branch
      %14 = sbr.rel (0) target = $region5
    $region4: #{tpu_custom_call.1} parent=1 // pred_region
      %s16 = ssub.s32 128, 128
      %17 = vsyncadd [#allocation3], %s16
      %s19 = sshll.u32 [#allocation2], 4
      %s20 = int_to_ptr.vmem [resolvable:$true] %s19
      %22 = dma.hbm_to_vmem [thread:$0]  %s0, 128, %s20, [#allocation3]
    $region5: #{tpu_custom_call.1} parent=1 // pred_fallthru
      _
    // Predicated region
    $region6: #{tpu_custom_call.1} parent=1 // pred_check
      _
    $region7: #{tpu_custom_call.1} parent=1 // pred_check_branch
      %24 = sbr.rel (0) target = $region9
    $region8: #{tpu_custom_call.1} parent=1 // pred_region
      %s26 = ssub.s32 512, 512
      %27 = vsyncadd [#allocation6], %s26
      %s28 = sshll.u32 [#allocation5], 4
      %s29 = int_to_ptr.vmem [resolvable:$true] %s28
      %34 = dma.hbm_to_vmem [thread:$0]  %s1, 512, %s29, [#allocation6], 128, 128, 8
    $region9: #{tpu_custom_call.1} parent=1 // pred_fallthru
      _
    // Predicated region
    $region10: #{tpu_custom_call.1} parent=1 // pred_check
      _
    $region11: #{tpu_custom_call.1} parent=1 // pred_check_branch
      %36 = sbr.rel (0) target = $region13
    $region12: #{tpu_custom_call.1} parent=1 // pred_region
      _
    $region13: #{tpu_custom_call.1} parent=1 // pred_fallthru
      _
    // Predicated region
    $region14: #{tpu_custom_call.1} parent=1 // pred_check
      _
    $region15: #{tpu_custom_call.1} parent=1 // pred_check_branch
      %38 = sbr.rel (0) target = $region17
    $region16: #{tpu_custom_call.1} parent=1 // pred_region
      %s40 = ssub.s32 2048, 2048
      %41 = vsyncadd [#allocation6], %s40
      %s42 = sshll.u32 [#allocation7], 4
      %s43 = int_to_ptr.vmem [resolvable:$true] %s42
      %48 = dma.hbm_to_vmem [thread:$0]  %s3, 2048, %s43, [#allocation6], 128, 128, 8
    $region17: #{tpu_custom_call.1} parent=1 // pred_fallthru
      _
    // Predicated region
    $region18: #{tpu_custom_call.1} parent=1 // pred_check
      _
    $region19: #{tpu_custom_call.1} parent=1 // pred_check_branch
      %50 = sbr.rel (0) target = $region21
    $region20: #{tpu_custom_call.1} parent=1 // pred_region
      _
    $region21: #{tpu_custom_call.1} parent=1 // pred_fallthru
      _
    // Predicated region
    $region22: #{tpu_custom_call.1} parent=1 // pred_check
      _
    $region23: #{tpu_custom_call.1} parent=1 // pred_check_branch
      %52 = sbr.rel (0) target = $region25
    $region24: #{tpu_custom_call.1} parent=1 // pred_region
      %53 = dma.done [#allocation3], 128
    $region25: #{tpu_custom_call.1} parent=1 // pred_fallthru
      _
    // Predicated region
    $region26: #{tpu_custom_call.1} parent=1 // pred_check
      _
    $region27: #{tpu_custom_call.1} parent=1 // pred_check_branch
      %55 = sbr.rel (0) target = $region29
    $region28: #{tpu_custom_call.1} parent=1 // pred_region
      %56 = dma.done [#allocation6], 512
    $region29: #{tpu_custom_call.1} parent=1 // pred_fallthru
      _
    // Predicated region
    $region30: #{tpu_custom_call.1} parent=1 // pred_check
      _
    $region31: #{tpu_custom_call.1} parent=1 // pred_check_branch
      %58 = sbr.rel (0) target = $region33
    $region32: #{tpu_custom_call.1} parent=1 // pred_region
      %59 = dma.done [#allocation6], 2048
    $region33: #{tpu_custom_call.1} parent=1 // pred_fallthru
      _
    %v60 = vld [vmem:[#allocation2] sm:$0xff]
    %v61 = vld [vmem:[#allocation5] sm:$0xff]
    %v62 = vld [vmem:[#allocation5 + $0x8] sm:$0xff]
    %v63 = vld [vmem:[#allocation5 + $0x10] sm:$0xff]
    %v64 = vld [vmem:[#allocation5 + $0x18] sm:$0xff]
    %v65 = vld [vmem:[%s2] sm:$0x1]
    %v67 = vlaneseq
    %v68 = vshrl.u32 %v67, 7
    %v69 = vsub.s32 0, %v68
    %v70 = vrot.slane %v65, %v69
    %vm72 = vcmask 261120
    %v74 = vsel %vm72, %v60, 0
    %76 = vmatprep.subr.mxu0 0.0
    %77 = vmatpush1.msra.mxu0 %v61
    %78 = vmatprep.subr.mxu0 0.0
    %79 = vmatpush1.msra.mxu0 %v62
    %80 = vmatprep.subr.mxu0 0.0
    %81 = vmatpush1.msra.mxu0 %v63
    %82 = vmatprep.subr.mxu0 0.0
    %83 = vmatpush1.msra.mxu0 %v64
    %84 = vmatprep.subr.mxu0 0.0
    %85 = vmatpush1.msra.mxu0 0.0
    %86 = vmatprep.subr.mxu0 0.0
    %87 = vmatpush1.msra.mxu0 0.0
    %88 = vmatprep.subr.mxu0 0.0
    %89 = vmatpush1.msra.mxu0 0.0
    %90 = vmatprep.subr.mxu0 0.0
    %91 = vmatpush1.msra.mxu0 0.0
    %92 = vmatprep.subr.mxu0 0.0
    %93 = vmatpush1.msra.mxu0 0.0
    %94 = vmatprep.subr.mxu0 0.0
    %95 = vmatpush1.msra.mxu0 0.0
    %96 = vmatprep.subr.mxu0 0.0
    %97 = vmatpush1.msra.mxu0 0.0
    %98 = vmatprep.subr.mxu0 0.0
    %99 = vmatpush1.msra.mxu0 0.0
    %100 = vmatprep.subr.mxu0 0.0
    %101 = vmatpush1.msra.mxu0 0.0
    %102 = vmatprep.subr.mxu0 0.0
    %103 = vmatpush1.msra.mxu0 0.0
    %104 = vmatprep.subr.mxu0 0.0
    %105 = vmatpush1.msra.mxu0 0.0
    %106 = vmatprep.subr.mxu0 0.0
    %107 = vmatpush1.msra.mxu0 0.0
    %108 = vmatprep.subr.mxu0 0.0
    %109 = vmatpush1.msra.mxu0 0.0
    %110 = vmatprep.subr.mxu0 0.0
    %111 = vmatpush1.msra.mxu0 0.0
    %112 = vmatprep.subr.mxu0 0.0
    %113 = vmatpush1.msra.mxu0 0.0
    %114 = vmatprep.subr.mxu0 0.0
    %115 = vmatpush1.msra.mxu0 0.0
    %116 = vmatprep.subr.mxu0 0.0
    %117 = vmatpush1.msra.mxu0 0.0
    %118 = vmatprep.subr.mxu0 0.0
    %119 = vmatpush1.msra.mxu0 0.0
    %120 = vmatprep.subr.mxu0 0.0
    %121 = vmatpush1.msra.mxu0 0.0
    %122 = vmatprep.subr.mxu0 0.0
    %123 = vmatpush1.msra.mxu0 0.0
    %124 = vmatprep.subr.mxu0 0.0
    %125 = vmatpush1.msra.mxu0 0.0
    %126 = vmatprep.subr.mxu0 0.0
    %127 = vmatpush1.msra.mxu0 0.0
    %128 = vmatprep.subr.mxu0 0.0
    %129 = vmatpush1.msra.mxu0 0.0
    %130 = vmatprep.subr.mxu0 0.0
    %131 = vmatpush1.msra.mxu0 0.0
    %132 = vmatprep.subr.mxu0 0.0
    %133 = vmatpush1.msra.mxu0 0.0
    %134 = vmatprep.subr.mxu0 0.0
    %135 = vmatpush1.msra.mxu0 0.0
    %136 = vmatprep.subr.mxu0 0.0
    %137 = vmatpush1.msra.mxu0 0.0
    %138 = vmatprep.subr.mxu0 0.0
    %139 = vmatpush1.msra.mxu0 0.0
    %140 = vmatprep.mubr.f32.mxu0 0.0
    %141 = vmatmul.mubr.f32.gmra.mrb[0].mxu0 %v74
    %v142 = vpop.f32.mrb[0].mxu0
    %v143 = vadd.f32 %v70, %v142
    %v144 = vpop.f32.mrb[0].mxu0
    %145 = vdwg.mxu0
    %v146 = vmax.f32 %v143, 0.0
    %v147 = vld [vmem:[#allocation7] sm:$0xff]
    %v148 = vld [vmem:[#allocation7 + $0x8] sm:$0xff]
    %v149 = vld [vmem:[#allocation7 + $0x10] sm:$0xff]
    %v150 = vld [vmem:[#allocation7 + $0x18] sm:$0xff]
    %v151 = vld [vmem:[#allocation7 + $0x20] sm:$0xff]
    %v152 = vld [vmem:[#allocation7 + $0x28] sm:$0xff]
    %v153 = vld [vmem:[#allocation7 + $0x30] sm:$0xff]
    %v154 = vld [vmem:[#allocation7 + $0x38] sm:$0xff]
    %v155 = vld [vmem:[#allocation7 + $0x40] sm:$0xff]
    %v156 = vld [vmem:[#allocation7 + $0x48] sm:$0xff]
    %v157 = vld [vmem:[#allocation7 + $0x50] sm:$0xff]
    %v158 = vld [vmem:[#allocation7 + $0x58] sm:$0xff]
    %v159 = vld [vmem:[#allocation7 + $0x60] sm:$0xff]
    %v160 = vld [vmem:[#allocation7 + $0x68] sm:$0xff]
    %v161 = vld [vmem:[#allocation7 + $0x70] sm:$0xff]
    %v162 = vld [vmem:[#allocation7 + $0x78] sm:$0xff]
    %v163 = vld [vmem:[%s4] sm:$0x1]
    %v165 = vlaneseq
    %v166 = vshrl.u32 %v165, 7
    %v167 = vsub.s32 0, %v166
    %v168 = vrot.slane %v163, %v167
    %170 = vmatprep.subr.mxu0 0.0
    %171 = vmatpush1.msra.mxu0 %v147
    %172 = vmatprep.subr.mxu0 0.0
    %173 = vmatpush1.msra.mxu0 %v148
    %174 = vmatprep.subr.mxu0 0.0
    %175 = vmatpush1.msra.mxu0 %v149
    %176 = vmatprep.subr.mxu0 0.0
    %177 = vmatpush1.msra.mxu0 %v150
    %178 = vmatprep.subr.mxu0 0.0
    %179 = vmatpush1.msra.mxu0 %v151
    %180 = vmatprep.subr.mxu0 0.0
    %181 = vmatpush1.msra.mxu0 %v152
    %182 = vmatprep.subr.mxu0 0.0
    %183 = vmatpush1.msra.mxu0 %v153
    %184 = vmatprep.subr.mxu0 0.0
    %185 = vmatpush1.msra.mxu0 %v154
    %186 = vmatprep.subr.mxu0 0.0
    %187 = vmatpush1.msra.mxu0 %v155
    %188 = vmatprep.subr.mxu0 0.0
    %189 = vmatpush1.msra.mxu0 %v156
    %190 = vmatprep.subr.mxu0 0.0
    %191 = vmatpush1.msra.mxu0 %v157
    %192 = vmatprep.subr.mxu0 0.0
    %193 = vmatpush1.msra.mxu0 %v158
    %194 = vmatprep.subr.mxu0 0.0
    %195 = vmatpush1.msra.mxu0 %v159
    %196 = vmatprep.subr.mxu0 0.0
    %197 = vmatpush1.msra.mxu0 %v160
    %198 = vmatprep.subr.mxu0 0.0
    %199 = vmatpush1.msra.mxu0 %v161
    %200 = vmatprep.subr.mxu0 0.0
    %201 = vmatpush1.msra.mxu0 %v162
    %202 = vmatprep.subr.mxu0 0.0
    %203 = vmatpush1.msra.mxu0 0.0
    %204 = vmatprep.subr.mxu0 0.0
    %205 = vmatpush1.msra.mxu0 0.0
    %206 = vmatprep.subr.mxu0 0.0
    %207 = vmatpush1.msra.mxu0 0.0
    %208 = vmatprep.subr.mxu0 0.0
    %209 = vmatpush1.msra.mxu0 0.0
    %210 = vmatprep.subr.mxu0 0.0
    %211 = vmatpush1.msra.mxu0 0.0
    %212 = vmatprep.subr.mxu0 0.0
    %213 = vmatpush1.msra.mxu0 0.0
    %214 = vmatprep.subr.mxu0 0.0
    %215 = vmatpush1.msra.mxu0 0.0
    %216 = vmatprep.subr.mxu0 0.0
    %217 = vmatpush1.msra.mxu0 0.0
    %218 = vmatprep.subr.mxu0 0.0
    %219 = vmatpush1.msra.mxu0 0.0
    %220 = vmatprep.subr.mxu0 0.0
    %221 = vmatpush1.msra.mxu0 0.0
    %222 = vmatprep.subr.mxu0 0.0
    %223 = vmatpush1.msra.mxu0 0.0
    %224 = vmatprep.subr.mxu0 0.0
    %225 = vmatpush1.msra.mxu0 0.0
    %226 = vmatprep.subr.mxu0 0.0
    %227 = vmatpush1.msra.mxu0 0.0
    %228 = vmatprep.subr.mxu0 0.0
    %229 = vmatpush1.msra.mxu0 0.0
    %230 = vmatprep.subr.mxu0 0.0
    %231 = vmatpush1.msra.mxu0 0.0
    %232 = vmatprep.subr.mxu0 0.0
    %233 = vmatpush1.msra.mxu0 0.0
    %234 = vmatprep.mubr.f32.mxu0 0.0
    %235 = vmatmul.mubr.f32.gmra.mrb[0].mxu0 %v146
    %v236 = vpop.f32.mrb[0].mxu0
    %v237 = vadd.f32 %v168, %v236
    %v238 = vpop.f32.mrb[0].mxu0
    %239 = vdwg.mxu0
    %240 = vst [vmem:[#allocation8] sm:$0xff] %v237
    // Predicated region
    $region34: #{tpu_custom_call.1} parent=1 // pred_check
      _
    $region35: #{tpu_custom_call.1} parent=1 // pred_check_branch
      %242 = sbr.rel (0) target = $region37
    $region36: #{tpu_custom_call.1} parent=1 // pred_region
      %s244 = ssub.s32 128, 128
      %245 = vsyncadd [#allocation4], %s244
      %s247 = sshll.u32 [#allocation8], 4
      %s248 = int_to_ptr.vmem [resolvable:$true] %s247
      %250 = dma.vmem_to_hbm [thread:$0]  %s248, 128, %s5, [#allocation4]
    $region37: #{tpu_custom_call.1} parent=1 // pred_fallthru
      _
    // Predicated region
    $region38: #{tpu_custom_call.1} parent=1 // pred_check
      _
    $region39: #{tpu_custom_call.1} parent=1 // pred_check_branch
      %252 = sbr.rel (0) target = $region41
    $region40: #{tpu_custom_call.1} parent=1 // pred_region
      %253 = dma.done [#allocation4], 128
    $region41: #{tpu_custom_call.1} parent=1 // pred_fallthru
      _
    %254 = vsyncpa [#allocation3], 1
    %255 = vsyncpa [#allocation6], 1
    %256 = vsyncpa [#allocation4], 1

</llo_original>
